<compile_context>
chip_gen: v5e
topology: v5e:2x2
jax: 0.10.0
libtpu: 0.0.40
codegen_flags: <defaults>
</compile_context>

<pallas_src>
import jax
import jax.numpy as jnp
from jax.experimental import pallas as pl
from jax.experimental.pallas import tpu as pltpu

NUM_STATES = 4      # CartPole-v1 observation dim
NUM_ACTIONS = 2     # CartPole-v1 action dim
HIDDEN = 128


def _round_up(x, m):
    return (x + m - 1) // m * m


def _pick_batch_tile(batch, batch_tile):
    """Pick a batch tile: big (overhead-bound kernel), multiple of 8, and
    capped at ~half the batch so the parallel grid has >=2 tiles (v7x 2-TC)."""
    if batch <= 8:
        return batch                      # single tiny block == full batch dim
    rb = _round_up(batch, 8)
    tb = min(batch_tile, rb)
    if rb <= tb and rb >= 16:
        tb = _round_up(pl.cdiv(rb, 2), 8)  # split into >=2 tiles for v7x TCs
    return tb


def _mlp_kernel(x_ref, w1_ref, b1_ref, w2_ref, b2_ref, w3_ref, b3_ref, o_ref):
    # fc1 (K = 4): far too shallow for a useful MXU pass -> 4 VPU FMAs with
    # lane/sublane broadcasts; these issue on VALU slots and overlap with the
    # fc2 MXU work.  (If bundle profiling on v5e shows VALU exposed, move this
    # onto the MXU via jnp.dot.)
    x = x_ref[...]                                   # (TB, 4)  f32
    w1 = w1_ref[...]                                 # (4, 128) f32
    h1 = (x[:, 0:1] * w1[0:1, :]
          + x[:, 1:2] * w1[1:2, :]
          + x[:, 2:3] * w1[2:3, :]
          + x[:, 3:4] * w1[3:4, :]
          + b1_ref[...])
    h1 = jnp.maximum(h1, 0.0)                        # (TB, 128) f32

    # fc2 / fc3: f32 operands on the MXU (idle-rich at these shapes), f32 acc.
    h2 = jnp.dot(h1, w2_ref[...], preferred_element_type=jnp.float32)
    h2 = jnp.maximum(h2 + b2_ref[...], 0.0)          # (TB, 128) f32

    out = jnp.dot(h2, w3_ref[...], preferred_element_type=jnp.float32)
    # Compact (TB, NUM_ACTIONS) store; tail rows of a ragged last tile are
    # dropped by Pallas on writeback.
    o_ref[...] = (out + b3_ref[...]).astype(o_ref.dtype)


def cartpole_net_forward(x, params, *, batch_tile=2048):
    """x: (batch, NUM_STATES) f32 -> (batch, NUM_ACTIONS) f32 logits."""
    w1, b1, w2, b2, w3, b3 = params
    batch = x.shape[0]

    tb = _pick_batch_tile(batch, batch_tile)
    n_tiles = pl.cdiv(batch, tb)

    # Constant index_map -> block stays VMEM-resident across the batch grid.
    const = lambda a: pl.BlockSpec(a.shape, lambda i: (0,) * a.ndim)

    return pl.pallas_call(
        _mlp_kernel,
        out_shape=jax.ShapeDtypeStruct((batch, NUM_ACTIONS), jnp.float32),
        grid_spec=pltpu.PrefetchScalarGridSpec(
            num_scalar_prefetch=0,
            grid=(n_tiles,),
            in_specs=[
                pl.BlockSpec((tb, NUM_STATES), lambda i: (i, 0)),   # x tile
                const(w1), const(b1),
                const(w2), const(b2),
                const(w3), const(b3),
            ],
            out_specs=pl.BlockSpec((tb, NUM_ACTIONS), lambda i: (i, 0)),
        ),
        compiler_params=pltpu.CompilerParams(
            dimension_semantics=("parallel",)),   # batch tiles split across TCs
    )(x, w1, b1, w2, b2, w3, b3)


def init_params(key):
    """nn.Linear-style U(-1/sqrt(fan_in), 1/sqrt(fan_in)) init, all f32.
    Weights stored (in_features, out_features)."""
    def uniform(k, shape, fan_in):
        bound = 1.0 / jnp.sqrt(jnp.float32(fan_in))
        return jax.random.uniform(k, shape, jnp.float32, -bound, bound)

    k1w, k1b, k2w, k2b, k3w, k3b = jax.random.split(key, 6)
    w1 = uniform(k1w, (NUM_STATES, HIDDEN), NUM_STATES)
    b1 = uniform(k1b, (1, HIDDEN), NUM_STATES)
    w2 = uniform(k2w, (HIDDEN, HIDDEN), HIDDEN)
    b2 = uniform(k2b, (1, HIDDEN), HIDDEN)
    w3 = uniform(k3w, (HIDDEN, NUM_ACTIONS), HIDDEN)
    b3 = uniform(k3b, (1, NUM_ACTIONS), HIDDEN)
    return w1, b1, w2, b2, w3, b3


def reference_forward(x, params):
    """Pure-JAX full-f32 reference matching the PyTorch module semantics."""
    w1, b1, w2, b2, w3, b3 = params
    hi = jax.lax.Precision.HIGHEST
    h1 = jnp.maximum(jnp.dot(x, w1, precision=hi) + b1, 0.0)
    h2 = jnp.maximum(jnp.dot(h1, w2, precision=hi) + b2, 0.0)
    return jnp.dot(h2, w3, precision=hi) + b3


if __name__ == "__main__":
    key = jax.random.PRNGKey(0)
    kx, kp = jax.random.split(key)
    params = init_params(kp)

    # Small single-tile case, a multi-tile case (exercises the 2-tile split for
    # v7x), and a ragged case with a forced tiny tile (exercises the cdiv grid
    # and dropped tail rows).
    cases = [(8, {}), (512, {}), (37, {"batch_tile": 16})]
    for batch, kwargs in cases:
        x = jax.random.normal(jax.random.fold_in(kx, batch),
                              (batch, NUM_STATES), jnp.float32)
        out = jax.block_until_ready(cartpole_net_forward(x, params, **kwargs))
        assert out.shape == (batch, NUM_ACTIONS)
        ref = reference_forward(x, params)
        assert jnp.allclose(out, ref, atol=5e-4, rtol=5e-4), (
            f"mismatch at batch={batch}: {jnp.max(jnp.abs(out - ref))}")

    print("KERNEL_OK")
</pallas_src>

<mosaic_0001>
module attributes {stable_mosaic.version = 11 : i64} {
  func.func @_mlp_kernel(%arg0: i32, %arg1: memref<8x4xf32, #tpu.memory_space<vmem>>, %arg2: memref<4x128xf32, #tpu.memory_space<vmem>>, %arg3: memref<1x128xf32, #tpu.memory_space<vmem>>, %arg4: memref<128x128xf32, #tpu.memory_space<vmem>>, %arg5: memref<1x128xf32, #tpu.memory_space<vmem>>, %arg6: memref<128x2xf32, #tpu.memory_space<vmem>>, %arg7: memref<1x2xf32, #tpu.memory_space<vmem>>, %arg8: memref<8x2xf32, #tpu.memory_space<vmem>>) attributes {dimension_semantics = [#tpu.dimension_semantics<parallel>], iteration_bounds = array<i64: 1>, scalar_prefetch = 0 : i64, scratch_operands = 0 : i64, tpu.core_type = #tpu.core_type<tc>, window_params = [{transform_indices = @transform_0, window_bounds = array<i64: 8, 4>}, {pipeline_mode = #tpu.pipeline_mode<synchronous>, transform_indices = @transform_1, window_bounds = array<i64: 4, 128>}, {pipeline_mode = #tpu.pipeline_mode<synchronous>, transform_indices = @transform_2, window_bounds = array<i64: 1, 128>}, {pipeline_mode = #tpu.pipeline_mode<synchronous>, transform_indices = @transform_3, window_bounds = array<i64: 128, 128>}, {pipeline_mode = #tpu.pipeline_mode<synchronous>, transform_indices = @transform_4, window_bounds = array<i64: 1, 128>}, {pipeline_mode = #tpu.pipeline_mode<synchronous>, transform_indices = @transform_5, window_bounds = array<i64: 128, 2>}, {pipeline_mode = #tpu.pipeline_mode<synchronous>, transform_indices = @transform_6, window_bounds = array<i64: 1, 2>}, {transform_indices = @transform_7, window_bounds = array<i64: 8, 2>}]} {
    %c0 = arith.constant 0 : index
    %c0_0 = arith.constant 0 : index
    %0 = vector.load %arg1[%c0, %c0_0] : memref<8x4xf32, #tpu.memory_space<vmem>>, vector<8x4xf32>
    %c0_1 = arith.constant 0 : index
    %c0_2 = arith.constant 0 : index
    %1 = vector.load %arg2[%c0_1, %c0_2] : memref<4x128xf32, #tpu.memory_space<vmem>>, vector<4x128xf32>
    %2 = vector.extract_strided_slice %0 {offsets = [0, 0], sizes = [8, 1], strides = [1, 1]} : vector<8x4xf32> to vector<8x1xf32>
    %3 = vector.extract_strided_slice %1 {offsets = [0, 0], sizes = [1, 128], strides = [1, 1]} : vector<4x128xf32> to vector<1x128xf32>
    %4 = vector.broadcast %2 : vector<8x1xf32> to vector<8x128xf32>
    %5 = vector.broadcast %3 : vector<1x128xf32> to vector<8x128xf32>
    %6 = arith.mulf %4, %5 : vector<8x128xf32>
    %7 = vector.extract_strided_slice %0 {offsets = [0, 1], sizes = [8, 1], strides = [1, 1]} : vector<8x4xf32> to vector<8x1xf32>
    %8 = vector.extract_strided_slice %1 {offsets = [1, 0], sizes = [1, 128], strides = [1, 1]} : vector<4x128xf32> to vector<1x128xf32>
    %9 = vector.broadcast %7 : vector<8x1xf32> to vector<8x128xf32>
    %10 = vector.broadcast %8 : vector<1x128xf32> to vector<8x128xf32>
    %11 = arith.mulf %9, %10 : vector<8x128xf32>
    %12 = arith.addf %6, %11 : vector<8x128xf32>
    %13 = vector.extract_strided_slice %0 {offsets = [0, 2], sizes = [8, 1], strides = [1, 1]} : vector<8x4xf32> to vector<8x1xf32>
    %14 = vector.extract_strided_slice %1 {offsets = [2, 0], sizes = [1, 128], strides = [1, 1]} : vector<4x128xf32> to vector<1x128xf32>
    %15 = vector.broadcast %13 : vector<8x1xf32> to vector<8x128xf32>
    %16 = vector.broadcast %14 : vector<1x128xf32> to vector<8x128xf32>
    %17 = arith.mulf %15, %16 : vector<8x128xf32>
    %18 = arith.addf %12, %17 : vector<8x128xf32>
    %19 = vector.extract_strided_slice %0 {offsets = [0, 3], sizes = [8, 1], strides = [1, 1]} : vector<8x4xf32> to vector<8x1xf32>
    %20 = vector.extract_strided_slice %1 {offsets = [3, 0], sizes = [1, 128], strides = [1, 1]} : vector<4x128xf32> to vector<1x128xf32>
    %21 = vector.broadcast %19 : vector<8x1xf32> to vector<8x128xf32>
    %22 = vector.broadcast %20 : vector<1x128xf32> to vector<8x128xf32>
    %23 = arith.mulf %21, %22 : vector<8x128xf32>
    %24 = arith.addf %18, %23 : vector<8x128xf32>
    %c0_3 = arith.constant 0 : index
    %c0_4 = arith.constant 0 : index
    %25 = vector.load %arg3[%c0_3, %c0_4] : memref<1x128xf32, #tpu.memory_space<vmem>>, vector<1x128xf32>
    %26 = vector.broadcast %25 : vector<1x128xf32> to vector<8x128xf32>
    %27 = arith.addf %24, %26 : vector<8x128xf32>
    %cst = arith.constant 0.000000e+00 : f32
    %28 = vector.broadcast %cst : f32 to vector<8x128xf32>
    %29 = arith.maximumf %27, %28 : vector<8x128xf32>
    %c0_5 = arith.constant 0 : index
    %c0_6 = arith.constant 0 : index
    %30 = vector.load %arg4[%c0_5, %c0_6] : memref<128x128xf32, #tpu.memory_space<vmem>>, vector<128x128xf32>
    %cst_7 = arith.constant dense<0.000000e+00> : vector<8x128xf32>
    %31 = tpu.matmul %29, %30, %cst_7 {dimension_numbers = #tpu.dot_dimension_numbers<[1], [0], [0], [1], [0, 0, 1, 1], [], []>} : vector<8x128xf32>, vector<128x128xf32>, vector<8x128xf32> -> vector<8x128xf32>
    %c0_8 = arith.constant 0 : index
    %c0_9 = arith.constant 0 : index
    %32 = vector.load %arg5[%c0_8, %c0_9] : memref<1x128xf32, #tpu.memory_space<vmem>>, vector<1x128xf32>
    %33 = vector.broadcast %32 : vector<1x128xf32> to vector<8x128xf32>
    %34 = arith.addf %31, %33 : vector<8x128xf32>
    %cst_10 = arith.constant 0.000000e+00 : f32
    %35 = vector.broadcast %cst_10 : f32 to vector<8x128xf32>
    %36 = arith.maximumf %34, %35 : vector<8x128xf32>
    %c0_11 = arith.constant 0 : index
    %c0_12 = arith.constant 0 : index
    %37 = vector.load %arg6[%c0_11, %c0_12] : memref<128x2xf32, #tpu.memory_space<vmem>>, vector<128x2xf32>
    %cst_13 = arith.constant dense<0.000000e+00> : vector<8x2xf32>
    %38 = tpu.matmul %36, %37, %cst_13 {dimension_numbers = #tpu.dot_dimension_numbers<[1], [0], [0], [1], [0, 0, 1, 1], [], []>} : vector<8x128xf32>, vector<128x2xf32>, vector<8x2xf32> -> vector<8x2xf32>
    %c0_14 = arith.constant 0 : index
    %c0_15 = arith.constant 0 : index
    %39 = vector.load %arg7[%c0_14, %c0_15] : memref<1x2xf32, #tpu.memory_space<vmem>>, vector<1x2xf32>
    %40 = vector.broadcast %39 : vector<1x2xf32> to vector<8x2xf32>
    %41 = arith.addf %38, %40 : vector<8x2xf32>
    %c0_16 = arith.constant 0 : index
    %c0_17 = arith.constant 0 : index
    %42 = vector.load %arg8[%c0_16, %c0_17] : memref<8x2xf32, #tpu.memory_space<vmem>>, vector<8x2xf32>
    tpu.vector_store %arg8[%c0_16, %c0_17], %41 {strides = array<i32>} : memref<8x2xf32, #tpu.memory_space<vmem>>, vector<8x2xf32>,
    return
  }
  func.func @transform_0(%arg0: i32) -> (i32, i32) {
    %c0_i32 = arith.constant 0 : i32
    %c0_i32_0 = arith.constant 0 : i32
    return %arg0, %c0_i32 : i32, i32
  }
  func.func @transform_1(%arg0: i32) -> (i32, i32) {
    %c0_i32 = arith.constant 0 : i32
    %c0_i32_0 = arith.constant 0 : i32
    %c0_i32_1 = arith.constant 0 : i32
    return %c0_i32, %c0_i32_0 : i32, i32
  }
  func.func @transform_2(%arg0: i32) -> (i32, i32) {
    %c0_i32 = arith.constant 0 : i32
    %c0_i32_0 = arith.constant 0 : i32
    %c0_i32_1 = arith.constant 0 : i32
    return %c0_i32, %c0_i32_0 : i32, i32
  }
  func.func @transform_3(%arg0: i32) -> (i32, i32) {
    %c0_i32 = arith.constant 0 : i32
    %c0_i32_0 = arith.constant 0 : i32
    %c0_i32_1 = arith.constant 0 : i32
    return %c0_i32, %c0_i32_0 : i32, i32
  }
  func.func @transform_4(%arg0: i32) -> (i32, i32) {
    %c0_i32 = arith.constant 0 : i32
    %c0_i32_0 = arith.constant 0 : i32
    %c0_i32_1 = arith.constant 0 : i32
    return %c0_i32, %c0_i32_0 : i32, i32
  }
  func.func @transform_5(%arg0: i32) -> (i32, i32) {
    %c0_i32 = arith.constant 0 : i32
    %c0_i32_0 = arith.constant 0 : i32
    %c0_i32_1 = arith.constant 0 : i32
    return %c0_i32, %c0_i32_0 : i32, i32
  }
  func.func @transform_6(%arg0: i32) -> (i32, i32) {
    %c0_i32 = arith.constant 0 : i32
    %c0_i32_0 = arith.constant 0 : i32
    %c0_i32_1 = arith.constant 0 : i32
    return %c0_i32, %c0_i32_0 : i32, i32
  }
  func.func @transform_7(%arg0: i32) -> (i32, i32) {
    %c0_i32 = arith.constant 0 : i32
    %c0_i32_0 = arith.constant 0 : i32
    return %arg0, %c0_i32 : i32, i32
  }
}

</mosaic_0001>

<llo_original>
// kernel: tpu_custom_call.1
$region0: #{tpu_custom_call.1}
  #allocation0 [shape = 'u32[]', space=smem, size = 0x4, offset = 0x4, fixed_abs, tag = 'smem constant byte address 0x4 - core index']
  #allocation1 [shape = 'u32[72,128]{1,0:T(1,128)}', space=vmem, size = 0x9000, scoped, tag = 'internal scratch']
  %s0 = inlined_call_operand.vmem [shape: f32[8,4], index: 0, kind: input, shape index: {}]
  %s1 = inlined_call_operand.vmem [shape: f32[4,128], index: 1, kind: input, shape index: {}]
  %s2 = inlined_call_operand.vmem [shape: f32[1,128], index: 2, kind: input, shape index: {}]
  %s3 = inlined_call_operand.vmem [shape: f32[128,128], index: 3, kind: input, shape index: {}]
  %s4 = inlined_call_operand.vmem [shape: f32[1,128], index: 4, kind: input, shape index: {}]
  %s5 = inlined_call_operand.vmem [shape: f32[128,2], index: 5, kind: input, shape index: {}]
  %s6 = inlined_call_operand.vmem [shape: f32[1,2], index: 6, kind: input, shape index: {}]
  %s7 = inlined_call_operand.vmem [shape: f32[8,2], index: 7, kind: output, shape index: {}]
  %s8 = sld [smem:[#allocation0]]
  $region38: #{tpu_custom_call.1} parent=0
    _
  %s10 = ssub.s32 1, %s8
  %s11 = scalar_select 0, %s10, %s8
  // Predicated region
  $region2: #{tpu_custom_call.1} parent=0 // pred_check
    _
  $region3: #{tpu_custom_call.1} parent=0 // pred_check_branch
    %13 = sbr.rel (0) target = $region5
  $region4: #{tpu_custom_call.1} parent=0 // pred_region
    _
  $region5: #{tpu_custom_call.1} parent=0 // pred_fallthru
    _
  // Predicated region
  $region6: #{tpu_custom_call.1} parent=0 // pred_check
    _
  $region7: #{tpu_custom_call.1} parent=0 // pred_check_branch
    %15 = sbr.rel (0) target = $region9
  $region8: #{tpu_custom_call.1} parent=0 // pred_region
    _
  $region9: #{tpu_custom_call.1} parent=0 // pred_fallthru
    _
  // Predicated region
  $region10: #{tpu_custom_call.1} parent=0 // pred_check
    _
  $region11: #{tpu_custom_call.1} parent=0 // pred_check_branch
    %17 = sbr.rel (0) target = $region13
  $region12: #{tpu_custom_call.1} parent=0 // pred_region
    _
  $region13: #{tpu_custom_call.1} parent=0 // pred_fallthru
    _
  // Predicated region
  $region14: #{tpu_custom_call.1} parent=0 // pred_check
    _
  $region15: #{tpu_custom_call.1} parent=0 // pred_check_branch
    %19 = sbr.rel (0) target = $region17
  $region16: #{tpu_custom_call.1} parent=0 // pred_region
    _
  $region17: #{tpu_custom_call.1} parent=0 // pred_fallthru
    _
  // Predicated region
  $region18: #{tpu_custom_call.1} parent=0 // pred_check
    _
  $region19: #{tpu_custom_call.1} parent=0 // pred_check_branch
    %21 = sbr.rel (0) target = $region21
  $region20: #{tpu_custom_call.1} parent=0 // pred_region
    _
  $region21: #{tpu_custom_call.1} parent=0 // pred_fallthru
    _
  // Predicated region
  $region22: #{tpu_custom_call.1} parent=0 // pred_check
    _
  $region23: #{tpu_custom_call.1} parent=0 // pred_check_branch
    %23 = sbr.rel (0) target = $region25
  $region24: #{tpu_custom_call.1} parent=0 // pred_region
    _
  $region25: #{tpu_custom_call.1} parent=0 // pred_fallthru
    _
  // Predicated region
  $region26: #{tpu_custom_call.1} parent=0 // pred_check
    _
  $region27: #{tpu_custom_call.1} parent=0 // pred_check_branch
    %25 = sbr.rel (0) target = $region29
  $region28: #{tpu_custom_call.1} parent=0 // pred_region
    _
  $region29: #{tpu_custom_call.1} parent=0 // pred_fallthru
    _
  %v26 = vld [vmem:[%s0] sm:$0xff]
  %v27 = vld [vmem:[%s1] sm:$0xf]
  %29 = vset.pattern.permute.xlu0 0
  %30 = vperm.xlu0 %29, %v26
  %v31 = vpop.permute.xlu0 %30
  %v33 = vperm.slane %v27, 0
  %v34 = vmul.f32 %v31, %v33
  %35 = vset.pattern.permute.xlu0 1
  %36 = vperm.xlu0 %35, %v26
  %v37 = vpop.permute.xlu0 %36
  %v39 = vperm.slane %v27, 1
  %v40 = vmul.f32 %v37, %v39
  %v41 = vadd.f32 %v34, %v40
  %42 = vset.pattern.permute.xlu0 2
  %43 = vperm.xlu0 %42, %v26
  %v44 = vpop.permute.xlu0 %43
  %v46 = vperm.slane %v27, 2
  %v47 = vmul.f32 %v44, %v46
  %v48 = vadd.f32 %v41, %v47
  %49 = vset.pattern.permute.xlu0 3
  %50 = vperm.xlu0 %49, %v26
  %v51 = vpop.permute.xlu0 %50
  %v53 = vperm.slane %v27, 3
  %v54 = vmul.f32 %v51, %v53
  %v55 = vadd.f32 %v48, %v54
  %v56 = vld [vmem:[%s2] sm:$0x1]
  %v58 = vperm.slane %v56, 0
  %v60 = vadd.f32 %v55, %v58
  %v61 = vmax.f32 %v60, 0.0
  %v62 = vld [vmem:[%s3] sm:$0xff]
  %v63 = vld [vmem:[%s3 + $0x8] sm:$0xff]
  %v64 = vld [vmem:[%s3 + $0x10] sm:$0xff]
  %v65 = vld [vmem:[%s3 + $0x18] sm:$0xff]
  %v66 = vld [vmem:[%s3 + $0x20] sm:$0xff]
  %v67 = vld [vmem:[%s3 + $0x28] sm:$0xff]
  %v68 = vld [vmem:[%s3 + $0x30] sm:$0xff]
  %v69 = vld [vmem:[%s3 + $0x38] sm:$0xff]
  %v70 = vld [vmem:[%s3 + $0x40] sm:$0xff]
  %v71 = vld [vmem:[%s3 + $0x48] sm:$0xff]
  %v72 = vld [vmem:[%s3 + $0x50] sm:$0xff]
  %v73 = vld [vmem:[%s3 + $0x58] sm:$0xff]
  %v74 = vld [vmem:[%s3 + $0x60] sm:$0xff]
  %v75 = vld [vmem:[%s3 + $0x68] sm:$0xff]
  %v76 = vld [vmem:[%s3 + $0x70] sm:$0xff]
  %v77 = vld [vmem:[%s3 + $0x78] sm:$0xff]
  %v78 = vld [vmem:[%s4] sm:$0x1]
  %v80 = vperm.slane %v78, 0
  %82 = vmatpush.msra.mxu0 %v77
  %83 = vmatpush.msra.mxu0 %v76
  %84 = vmatpush.msra.mxu0 %v75
  %85 = vmatpush.msra.mxu0 %v74
  %86 = vmatpush.msra.mxu0 %v73
  %87 = vmatpush.msra.mxu0 %v72
  %88 = vmatpush.msra.mxu0 %v71
  %89 = vmatpush.msra.mxu0 %v70
  %90 = vmatpush.msra.mxu0 %v69
  %91 = vmatpush.msra.mxu0 %v68
  %92 = vmatpush.msra.mxu0 %v67
  %93 = vmatpush.msra.mxu0 %v66
  %94 = vmatpush.msra.mxu0 %v65
  %95 = vmatpush.msra.mxu0 %v64
  %96 = vmatpush.msra.mxu0 %v63
  %97 = vmatpush.msra.mxu0 %v62
  %98 = vmatmul.f32.gmra.mxu0 %v61
  %v99 = vpop.f32.mrf.mxu0
  %v100 = vadd.f32 %v80, %v99
  %101 = vdwg.mxu0
  %v102 = vmax.f32 %v100, 0.0
  %v103 = vld [vmem:[%s5] sm:$0xff]
  %v104 = vld [vmem:[%s5 + $0x8] sm:$0xff]
  %v105 = vld [vmem:[%s5 + $0x10] sm:$0xff]
  %v106 = vld [vmem:[%s5 + $0x18] sm:$0xff]
  %v107 = vld [vmem:[%s5 + $0x20] sm:$0xff]
  %v108 = vld [vmem:[%s5 + $0x28] sm:$0xff]
  %v109 = vld [vmem:[%s5 + $0x30] sm:$0xff]
  %v110 = vld [vmem:[%s5 + $0x38] sm:$0xff]
  %v111 = vld [vmem:[%s5 + $0x40] sm:$0xff]
  %v112 = vld [vmem:[%s5 + $0x48] sm:$0xff]
  %v113 = vld [vmem:[%s5 + $0x50] sm:$0xff]
  %v114 = vld [vmem:[%s5 + $0x58] sm:$0xff]
  %v115 = vld [vmem:[%s5 + $0x60] sm:$0xff]
  %v116 = vld [vmem:[%s5 + $0x68] sm:$0xff]
  %v117 = vld [vmem:[%s5 + $0x70] sm:$0xff]
  %v118 = vld [vmem:[%s5 + $0x78] sm:$0xff]
  %v119 = vld [vmem:[%s6] sm:$0x1]
  %v121 = vperm.slane %v119, 0
  %123 = vmatpush.msra.mxu0 %v118
  %124 = vmatpush.msra.mxu0 %v117
  %125 = vmatpush.msra.mxu0 %v116
  %126 = vmatpush.msra.mxu0 %v115
  %127 = vmatpush.msra.mxu0 %v114
  %128 = vmatpush.msra.mxu0 %v113
  %129 = vmatpush.msra.mxu0 %v112
  %130 = vmatpush.msra.mxu0 %v111
  %131 = vmatpush.msra.mxu0 %v110
  %132 = vmatpush.msra.mxu0 %v109
  %133 = vmatpush.msra.mxu0 %v108
  %134 = vmatpush.msra.mxu0 %v107
  %135 = vmatpush.msra.mxu0 %v106
  %136 = vmatpush.msra.mxu0 %v105
  %137 = vmatpush.msra.mxu0 %v104
  %138 = vmatpush.msra.mxu0 %v103
  %139 = vmatmul.f32.gmra.mxu0 %v102
  %v140 = vpop.f32.mrf.mxu0
  %v141 = vadd.f32 %v121, %v140
  %142 = vdwg.mxu0
  %vm143 = vcmask 15360
  %144 = vst.msk [vmem:[%s7] sm:$0xff] %vm143, %v141
  // Predicated region
  $region30: #{tpu_custom_call.1} parent=0 // pred_check
    _
  $region31: #{tpu_custom_call.1} parent=0 // pred_check_branch
    %146 = sbr.rel (0) target = $region33
  $region32: #{tpu_custom_call.1} parent=0 // pred_region
    _
  $region33: #{tpu_custom_call.1} parent=0 // pred_fallthru
    _
  // Predicated region
  $region34: #{tpu_custom_call.1} parent=0 // pred_check
    _
  $region35: #{tpu_custom_call.1} parent=0 // pred_check_branch
    %148 = sbr.rel (0) target = $region37
  $region36: #{tpu_custom_call.1} parent=0 // pred_region
    _
  $region37: #{tpu_custom_call.1} parent=0 // pred_fallthru
    _

</llo_original>
